<compile_context>
chip_gen: v7x
topology: tpu7x:2x2x1
jax: 0.10.0
libtpu: 0.0.40
codegen_flags: <defaults>
</compile_context>

<pallas_src>
import jax
import jax.numpy as jnp
from jax.experimental import pallas as pl
from jax.experimental.pallas import tpu as pltpu

# Module hyper-parameters (synthetic, deterministic).
IN_SCALAR = 16
OUT_SCALAR = 32
OUT_VECTOR = 16
VECTOR_NORMALIZER = 20.0

_VEC_FLAT = 3 * OUT_VECTOR          # 48 lanes, component-minor (index = o*3 + c)
_VMEM_BUDGET_BYTES = 40 << 20       # double-buffered row-block budget (v7x-safe)
_VMEM_LIMIT_FLOOR = 32 << 20        # never below the v6e/v7x default scoped limit
_VMEM_LIMIT_CAP = 48 << 20          # stay <= ~48 MiB of v7x's 64 MiB physical VMEM


def _round_up(x, m):
    return ((x + m - 1) // m) * m


def _per_row_vmem_bytes(block_f):
    """Double-buffered, lane-padded VMEM bytes per row of the 4 row-blocked arrays."""
    lane = lambda c: _round_up(c, 128)
    return 2 * 4 * (lane(block_f) + lane(3) + lane(OUT_SCALAR) + lane(_VEC_FLAT))


def _choose_tile_n(n, cap, block_f):
    if n <= 8:
        return n
    # Rows that fit the VMEM budget (multiple of 8 for the (8,128) sublane rule).
    vmem_rows = max(8, (_VMEM_BUDGET_BYTES // _per_row_vmem_bytes(block_f)) // 8 * 8)
    # Guarantee >= 2 grid steps so v7x's second TensorCore gets work.
    half = _round_up(pl.cdiv(n, 2), 8)
    return max(8, min(cap, half, vmem_rows))


def atom_embedding_kernel(x_ref, vec_ref, wsca_ref, bsca_ref, svec_ref, bvec_ref,
                          sca_out_ref, vec_out_ref):
    # --- scalar branch: Linear(in_scalar, out_scalar) on the MXU ---
    # x_ref: (tile_n, block_f); slice the VMEM ref in-kernel (free, no HBM copy).
    x = x_ref[:, :IN_SCALAR]                                      # (tile_n, in_scalar)
    sca = jnp.dot(x, wsca_ref[...], preferred_element_type=jnp.float32)
    sca_out_ref[...] = (sca + bsca_ref[...]).astype(sca_out_ref.dtype)

    # --- vector branch: Linear(1, out_vector) on each of the 3 components ---
    # One tiny matmul producing a lane-dense (tile_n, 3*OV) slab:
    #   svec_ref[c, o*3 + c'] = W_vec[o] * (c == c')
    #   => out[n, o*3 + c] = (v[n, c] / normalizer) * W_vec[o] + b_vec[o]
    v = vec_ref[...] / VECTOR_NORMALIZER                          # (tile_n, 3)
    vec = jnp.dot(v, svec_ref[...], preferred_element_type=jnp.float32)
    vec_out_ref[...] = (vec + bvec_ref[...]).astype(vec_out_ref.dtype)


def atom_embedding_vn(scalar_input, vector_input, w_sca_t, b_sca, w_vec_t, b_vec,
                      *, tile_n_cap=8192, out_dtype=jnp.float32):
    """JAX wrapper reproducing AtomEmbeddingVN.forward.

    scalar_input: [N, F] with F >= IN_SCALAR (sliced inside the kernel)
    vector_input: [N, 3]
    w_sca_t: [IN_SCALAR, OUT_SCALAR], b_sca: [1, OUT_SCALAR]
    w_vec_t: [1, OUT_VECTOR],         b_vec: [1, OUT_VECTOR]
    Returns (sca_emb [N, OUT_SCALAR], vec_emb [N, OUT_VECTOR, 3]).
    """
    assert vector_input.shape[1:] == (3,), "Only one 3-vector per atom is supported"
    n, f = scalar_input.shape
    assert f >= IN_SCALAR

    # Tiny derived parameters (built once, outside the kernel):
    #   S[c, o*3 + c'] = W_vec[o] * (c == c')   -> (3, 3*OV)
    #   b_rep[0, o*3 + c] = b_vec[o]            -> (1, 3*OV)
    s_vec = jnp.kron(w_vec_t.astype(jnp.float32), jnp.eye(3, dtype=jnp.float32))
    b_rep = jnp.repeat(b_vec.astype(jnp.float32), 3, axis=1)

    # Don't DMA unused trailing feature columns when F is wide: only the first
    # 128-lane column block (>= IN_SCALAR) is ever read from HBM.
    block_f = f if f < 128 else 128

    tile_n = _choose_tile_n(n, tile_n_cap, block_f)
    grid = (pl.cdiv(n, tile_n),)

    # Scoped VMEM: enough for the double-buffered row blocks plus headroom,
    # floored at the default 32 MiB, capped at 48 MiB (v7x-safe).
    footprint = tile_n * _per_row_vmem_bytes(block_f)
    vmem_limit = int(min(_VMEM_LIMIT_CAP, max(_VMEM_LIMIT_FLOOR, footprint + (4 << 20))))

    cost = pl.CostEstimate(
        flops=int(n * (2 * IN_SCALAR * OUT_SCALAR + 2 * 3 * _VEC_FLAT)),
        transcendentals=0,
        bytes_accessed=int(4 * (n * (block_f + 3 + OUT_SCALAR + _VEC_FLAT)
                                + IN_SCALAR * OUT_SCALAR + OUT_SCALAR
                                + 3 * _VEC_FLAT + _VEC_FLAT)),
    )

    sca_out, vec_out2d = pl.pallas_call(
        atom_embedding_kernel,
        out_shape=(
            jax.ShapeDtypeStruct((n, OUT_SCALAR), out_dtype),
            jax.ShapeDtypeStruct((n, _VEC_FLAT), out_dtype),
        ),
        grid=grid,
        in_specs=[
            pl.BlockSpec((tile_n, block_f), lambda i: (i, 0)),           # scalar_input
            pl.BlockSpec((tile_n, 3), lambda i: (i, 0)),                 # vector_input
            pl.BlockSpec((IN_SCALAR, OUT_SCALAR), lambda i: (0, 0)),     # W_sca^T (resident)
            pl.BlockSpec((1, OUT_SCALAR), lambda i: (0, 0)),             # b_sca   (resident)
            pl.BlockSpec((3, _VEC_FLAT), lambda i: (0, 0)),              # S_vec   (resident)
            pl.BlockSpec((1, _VEC_FLAT), lambda i: (0, 0)),              # b_rep   (resident)
        ],
        out_specs=(
            pl.BlockSpec((tile_n, OUT_SCALAR), lambda i: (i, 0)),
            pl.BlockSpec((tile_n, _VEC_FLAT), lambda i: (i, 0)),
        ),
        compiler_params=pltpu.CompilerParams(
            dimension_semantics=("parallel",),
            vmem_limit_bytes=vmem_limit,
        ),
        cost_estimate=cost,
    )(scalar_input, vector_input, w_sca_t, b_sca, s_vec, b_rep)

    # [N, 3*OV] is laid out ov-major / component-minor, so the PyTorch
    # .transpose(1, -1) is a free reshape here (no extra HBM pass).
    vec_emb = vec_out2d.reshape(n, OUT_VECTOR, 3)
    return sca_out, vec_emb


def _reference(scalar_input, vector_input, w_sca_t, b_sca, w_vec_t, b_vec):
    x = scalar_input[:, :IN_SCALAR]
    sca_emb = x @ w_sca_t + b_sca[0]
    v = vector_input / VECTOR_NORMALIZER                           # (N, 3)
    vec = v[:, :, None] * w_vec_t[0][None, None, :] + b_vec[0]     # (N, 3, OV)
    return sca_emb, jnp.transpose(vec, (0, 2, 1))                  # (N, OV, 3)


def _run_case(key, n, f_extra):
    k1, k2, k3, k4, k5, k6 = jax.random.split(key, 6)

    scalar_input = jax.random.normal(k1, (n, f_extra), dtype=jnp.float32)
    vector_input = jax.random.normal(k2, (n, 3), dtype=jnp.float32)

    # Deterministic "Linear" parameters.
    # emb_sca: weight (OUT_SCALAR, IN_SCALAR), bias (OUT_SCALAR,) -> pass W^T and 2-D bias
    w_sca = jax.random.normal(k3, (OUT_SCALAR, IN_SCALAR), dtype=jnp.float32) * 0.1
    b_sca = jax.random.normal(k4, (OUT_SCALAR,), dtype=jnp.float32) * 0.1
    # emb_vec: weight (OUT_VECTOR, 1), bias (OUT_VECTOR,)         -> pass W^T (1, OV)
    w_vec = jax.random.normal(k5, (OUT_VECTOR, 1), dtype=jnp.float32) * 0.1
    b_vec = jax.random.normal(k6, (OUT_VECTOR,), dtype=jnp.float32) * 0.1

    w_sca_t = w_sca.T                       # (IN_SCALAR, OUT_SCALAR)
    b_sca_2d = b_sca[None, :]               # (1, OUT_SCALAR)
    w_vec_t = w_vec.T                       # (1, OUT_VECTOR)
    b_vec_2d = b_vec[None, :]               # (1, OUT_VECTOR)

    sca_emb, vec_emb = atom_embedding_vn(scalar_input, vector_input,
                                         w_sca_t, b_sca_2d, w_vec_t, b_vec_2d)
    jax.block_until_ready((sca_emb, vec_emb))

    sca_ref, vec_ref = _reference(scalar_input, vector_input,
                                  w_sca_t, b_sca_2d, w_vec_t, b_vec_2d)

    assert sca_emb.shape == (n, OUT_SCALAR)
    assert vec_emb.shape == (n, OUT_VECTOR, 3)
    assert jnp.allclose(sca_emb, sca_ref, atol=1e-5, rtol=1e-5)
    assert jnp.allclose(vec_emb, vec_ref, atol=1e-5, rtol=1e-5)


if __name__ == "__main__":
    key = jax.random.PRNGKey(0)
    k_a, k_b, k_c = jax.random.split(key, 3)

    # Small canonical case (single grid step).
    _run_case(k_a, n=8, f_extra=20)
    # Multi-step grid with a partial final tile (exercises >=2 TC-shardable steps).
    _run_case(k_b, n=300, f_extra=20)
    # Wide feature input (exercises the 128-lane input block cap + in-kernel slice).
    _run_case(k_c, n=64, f_extra=200)

    print("KERNEL_OK")
</pallas_src>

<mosaic_0001>
module attributes {stable_mosaic.version = 11 : i64} {
  func.func @atom_embedding_kernel(%arg0: i32, %arg1: memref<8x20xf32, #tpu.memory_space<vmem>>, %arg2: memref<8x3xf32, #tpu.memory_space<vmem>>, %arg3: memref<16x32xf32, #tpu.memory_space<vmem>>, %arg4: memref<1x32xf32, #tpu.memory_space<vmem>>, %arg5: memref<3x48xf32, #tpu.memory_space<vmem>>, %arg6: memref<1x48xf32, #tpu.memory_space<vmem>>, %arg7: memref<8x32xf32, #tpu.memory_space<vmem>>, %arg8: memref<8x48xf32, #tpu.memory_space<vmem>>) attributes {dimension_semantics = [#tpu.dimension_semantics<parallel>], iteration_bounds = array<i64: 1>, scalar_prefetch = 0 : i64, scratch_operands = 0 : i64, tpu.core_type = #tpu.core_type<tc>, window_params = [{transform_indices = @transform_0, window_bounds = array<i64: 8, 20>}, {transform_indices = @transform_1, window_bounds = array<i64: 8, 3>}, {pipeline_mode = #tpu.pipeline_mode<synchronous>, transform_indices = @transform_2, window_bounds = array<i64: 16, 32>}, {pipeline_mode = #tpu.pipeline_mode<synchronous>, transform_indices = @transform_3, window_bounds = array<i64: 1, 32>}, {pipeline_mode = #tpu.pipeline_mode<synchronous>, transform_indices = @transform_4, window_bounds = array<i64: 3, 48>}, {pipeline_mode = #tpu.pipeline_mode<synchronous>, transform_indices = @transform_5, window_bounds = array<i64: 1, 48>}, {transform_indices = @transform_6, window_bounds = array<i64: 8, 32>}, {transform_indices = @transform_7, window_bounds = array<i64: 8, 48>}]} {
    %c0 = arith.constant 0 : index
    %c0_0 = arith.constant 0 : index
    %0 = vector.load %arg1[%c0, %c0_0] : memref<8x20xf32, #tpu.memory_space<vmem>>, vector<8x16xf32>
    %c0_1 = arith.constant 0 : index
    %c0_2 = arith.constant 0 : index
    %1 = vector.load %arg3[%c0_1, %c0_2] : memref<16x32xf32, #tpu.memory_space<vmem>>, vector<16x32xf32>
    %cst = arith.constant dense<0.000000e+00> : vector<8x32xf32>
    %2 = tpu.matmul %0, %1, %cst {dimension_numbers = #tpu.dot_dimension_numbers<[1], [0], [0], [1], [0, 0, 1, 1], [], []>} : vector<8x16xf32>, vector<16x32xf32>, vector<8x32xf32> -> vector<8x32xf32>
    %c0_3 = arith.constant 0 : index
    %c0_4 = arith.constant 0 : index
    %3 = vector.load %arg4[%c0_3, %c0_4] : memref<1x32xf32, #tpu.memory_space<vmem>>, vector<1x32xf32>
    %4 = vector.broadcast %3 : vector<1x32xf32> to vector<8x32xf32>
    %5 = arith.addf %2, %4 : vector<8x32xf32>
    %c0_5 = arith.constant 0 : index
    %c0_6 = arith.constant 0 : index
    %6 = vector.load %arg7[%c0_5, %c0_6] : memref<8x32xf32, #tpu.memory_space<vmem>>, vector<8x32xf32>
    tpu.vector_store %arg7[%c0_5, %c0_6], %5 {strides = array<i32>} : memref<8x32xf32, #tpu.memory_space<vmem>>, vector<8x32xf32>,
    %c0_7 = arith.constant 0 : index
    %c0_8 = arith.constant 0 : index
    %7 = vector.load %arg2[%c0_7, %c0_8] : memref<8x3xf32, #tpu.memory_space<vmem>>, vector<8x3xf32>
    %cst_9 = arith.constant 2.000000e+01 : f32
    %8 = vector.broadcast %cst_9 : f32 to vector<8x3xf32>
    %9 = arith.divf %7, %8 : vector<8x3xf32>
    %c0_10 = arith.constant 0 : index
    %c0_11 = arith.constant 0 : index
    %10 = vector.load %arg5[%c0_10, %c0_11] : memref<3x48xf32, #tpu.memory_space<vmem>>, vector<3x48xf32>
    %cst_12 = arith.constant dense<0.000000e+00> : vector<8x48xf32>
    %11 = tpu.matmul %9, %10, %cst_12 {dimension_numbers = #tpu.dot_dimension_numbers<[1], [0], [0], [1], [0, 0, 1, 1], [], []>} : vector<8x3xf32>, vector<3x48xf32>, vector<8x48xf32> -> vector<8x48xf32>
    %c0_13 = arith.constant 0 : index
    %c0_14 = arith.constant 0 : index
    %12 = vector.load %arg6[%c0_13, %c0_14] : memref<1x48xf32, #tpu.memory_space<vmem>>, vector<1x48xf32>
    %13 = vector.broadcast %12 : vector<1x48xf32> to vector<8x48xf32>
    %14 = arith.addf %11, %13 : vector<8x48xf32>
    %c0_15 = arith.constant 0 : index
    %c0_16 = arith.constant 0 : index
    %15 = vector.load %arg8[%c0_15, %c0_16] : memref<8x48xf32, #tpu.memory_space<vmem>>, vector<8x48xf32>
    tpu.vector_store %arg8[%c0_15, %c0_16], %14 {strides = array<i32>} : memref<8x48xf32, #tpu.memory_space<vmem>>, vector<8x48xf32>,
    return
  }
  func.func @transform_0(%arg0: i32) -> (i32, i32) {
    %c0_i32 = arith.constant 0 : i32
    %c0_i32_0 = arith.constant 0 : i32
    return %arg0, %c0_i32 : i32, i32
  }
  func.func @transform_1(%arg0: i32) -> (i32, i32) {
    %c0_i32 = arith.constant 0 : i32
    %c0_i32_0 = arith.constant 0 : i32
    return %arg0, %c0_i32 : i32, i32
  }
  func.func @transform_2(%arg0: i32) -> (i32, i32) {
    %c0_i32 = arith.constant 0 : i32
    %c0_i32_0 = arith.constant 0 : i32
    %c0_i32_1 = arith.constant 0 : i32
    return %c0_i32, %c0_i32_0 : i32, i32
  }
  func.func @transform_3(%arg0: i32) -> (i32, i32) {
    %c0_i32 = arith.constant 0 : i32
    %c0_i32_0 = arith.constant 0 : i32
    %c0_i32_1 = arith.constant 0 : i32
    return %c0_i32, %c0_i32_0 : i32, i32
  }
  func.func @transform_4(%arg0: i32) -> (i32, i32) {
    %c0_i32 = arith.constant 0 : i32
    %c0_i32_0 = arith.constant 0 : i32
    %c0_i32_1 = arith.constant 0 : i32
    return %c0_i32, %c0_i32_0 : i32, i32
  }
  func.func @transform_5(%arg0: i32) -> (i32, i32) {
    %c0_i32 = arith.constant 0 : i32
    %c0_i32_0 = arith.constant 0 : i32
    %c0_i32_1 = arith.constant 0 : i32
    return %c0_i32, %c0_i32_0 : i32, i32
  }
  func.func @transform_6(%arg0: i32) -> (i32, i32) {
    %c0_i32 = arith.constant 0 : i32
    %c0_i32_0 = arith.constant 0 : i32
    return %arg0, %c0_i32 : i32, i32
  }
  func.func @transform_7(%arg0: i32) -> (i32, i32) {
    %c0_i32 = arith.constant 0 : i32
    %c0_i32_0 = arith.constant 0 : i32
    return %arg0, %c0_i32 : i32, i32
  }
}

</mosaic_0001>

<llo_original>
// kernel: tpu_custom_call.1
$region0: #{tpu_custom_call.1}
  #allocation0 [shape = 'u32[]', space=smem, size = 0x4, offset = 0x4, fixed_abs, tag = 'smem constant byte address 0x4 - core index']
  #allocation1 [shape = 'u32[144,128]{1,0:T(1,128)}', space=vmem, size = 0x12000, scoped, tag = 'internal scratch']
  %s0 = inlined_call_operand.hbm [shape: f32[8,20], index: 0, kind: input, shape index: {}]
  %s1 = inlined_call_operand.vmem [shape: f32[8,3], index: 1, kind: input, shape index: {}]
  %s2 = inlined_call_operand.vmem [shape: f32[16,32], index: 2, kind: input, shape index: {}]
  %s3 = inlined_call_operand.vmem [shape: f32[1,32], index: 3, kind: input, shape index: {}]
  %s4 = inlined_call_operand.vmem [shape: f32[3,48], index: 4, kind: input, shape index: {}]
  %s5 = inlined_call_operand.vmem [shape: f32[1,48], index: 5, kind: input, shape index: {}]
  %s6 = inlined_call_operand.hbm [shape: f32[8,32], index: 6, kind: output, shape index: {0}]
  %s7 = inlined_call_operand.hbm [shape: f32[8,48], index: 7, kind: output, shape index: {1}]
  %8 = xla_tuple %s6, %s7
  %s9 = sld [smem:[#allocation0]]
  $region46: #{tpu_custom_call.1} parent=0
    _
  %s11 = ssub.s32 1, %s9
  %s12 = scalar_select 0, %s11, %s9
  $region1: #{tpu_custom_call.1} parent=0
    #allocation2 [shape = 'u8[4096]{0}', space=vmem, size = 0x1000, scoped, tag = 'input window, operand 0, single buffered']
    #allocation3 [shape = 's32[1]{0}', space=sflag, size = 0x4, scoped, tag = 'scoped memory for tpu_custom_call.1']
    #allocation4 [shape = 's32[1]{0}', space=sflag, size = 0x4, scoped, tag = 'scoped memory for tpu_custom_call.1']
    #allocation5 [shape = 'u8[4096]{0}', space=vmem, size = 0x1000, scoped, tag = 'output window, operand 0, single buffered']
    #allocation6 [shape = 'u8[4096]{0}', space=vmem, size = 0x1000, scoped, tag = 'output window, operand 1, single buffered']
    #allocation7 [shape = 's32[1]{0}', space=sflag, size = 0x4, scoped, tag = 'scoped memory for tpu_custom_call.1']
    %13 = vsyncpa [#allocation3], 0
    %14 = vsyncpa [#allocation4], 0
    %15 = vsyncpa [#allocation7], 0
    // Predicated region
    $region2: #{tpu_custom_call.1} parent=1 // pred_check
      _
    $region3: #{tpu_custom_call.1} parent=1 // pred_check_branch
      %17 = sbr.rel (0) target = $region5
    $region4: #{tpu_custom_call.1} parent=1 // pred_region
      %s19 = ssub.s32 128, 128
      %20 = vsyncadd [#allocation3], %s19
      %s22 = sshll.u32 [#allocation2], 4
      %s23 = int_to_ptr.vmem [resolvable:$true] %s22
      %25 = dma.hbm_to_vmem [thread:$0]  %s0, 128, %s23, [#allocation3]
    $region5: #{tpu_custom_call.1} parent=1 // pred_fallthru
      _
    // Predicated region
    $region6: #{tpu_custom_call.1} parent=1 // pred_check
      _
    $region7: #{tpu_custom_call.1} parent=1 // pred_check_branch
      %27 = sbr.rel (0) target = $region9
    $region8: #{tpu_custom_call.1} parent=1 // pred_region
      _
    $region9: #{tpu_custom_call.1} parent=1 // pred_fallthru
      _
    // Predicated region
    $region10: #{tpu_custom_call.1} parent=1 // pred_check
      _
    $region11: #{tpu_custom_call.1} parent=1 // pred_check_branch
      %29 = sbr.rel (0) target = $region13
    $region12: #{tpu_custom_call.1} parent=1 // pred_region
      _
    $region13: #{tpu_custom_call.1} parent=1 // pred_fallthru
      _
    // Predicated region
    $region14: #{tpu_custom_call.1} parent=1 // pred_check
      _
    $region15: #{tpu_custom_call.1} parent=1 // pred_check_branch
      %31 = sbr.rel (0) target = $region17
    $region16: #{tpu_custom_call.1} parent=1 // pred_region
      _
    $region17: #{tpu_custom_call.1} parent=1 // pred_fallthru
      _
    // Predicated region
    $region18: #{tpu_custom_call.1} parent=1 // pred_check
      _
    $region19: #{tpu_custom_call.1} parent=1 // pred_check_branch
      %33 = sbr.rel (0) target = $region21
    $region20: #{tpu_custom_call.1} parent=1 // pred_region
      _
    $region21: #{tpu_custom_call.1} parent=1 // pred_fallthru
      _
    // Predicated region
    $region22: #{tpu_custom_call.1} parent=1 // pred_check
      _
    $region23: #{tpu_custom_call.1} parent=1 // pred_check_branch
      %35 = sbr.rel (0) target = $region25
    $region24: #{tpu_custom_call.1} parent=1 // pred_region
      _
    $region25: #{tpu_custom_call.1} parent=1 // pred_fallthru
      _
    // Predicated region
    $region26: #{tpu_custom_call.1} parent=1 // pred_check
      _
    $region27: #{tpu_custom_call.1} parent=1 // pred_check_branch
      %37 = sbr.rel (0) target = $region29
    $region28: #{tpu_custom_call.1} parent=1 // pred_region
      %38 = dma.done [#allocation3], 128
    $region29: #{tpu_custom_call.1} parent=1 // pred_fallthru
      _
    %v39 = vld [vmem:[#allocation2] sm:$0xff]
    %v40 = vld [vmem:[%s2] sm:$0xff]
    %v41 = vld [vmem:[%s2 + $0x8] sm:$0xff]
    %v42 = vld [vmem:[%s3] sm:$0x1]
    %v44 = vlaneseq
    %v45 = vshrl.u32 %v44, 7
    %v46 = vsub.s32 0, %v45
    %v47 = vrot.slane %v42, %v46
    %vm49 = vcmask 130048
    %v51 = vsel %vm49, %v39, 0
    %53 = vmatprep.subr.mxu0 0.0
    %54 = vmatpush1.msra.mxu0 %v40
    %55 = vmatprep.subr.mxu0 0.0
    %56 = vmatpush1.msra.mxu0 %v41
    %57 = vmatprep.subr.mxu0 0.0
    %58 = vmatpush1.msra.mxu0 0.0
    %59 = vmatprep.subr.mxu0 0.0
    %60 = vmatpush1.msra.mxu0 0.0
    %61 = vmatprep.subr.mxu0 0.0
    %62 = vmatpush1.msra.mxu0 0.0
    %63 = vmatprep.subr.mxu0 0.0
    %64 = vmatpush1.msra.mxu0 0.0
    %65 = vmatprep.subr.mxu0 0.0
    %66 = vmatpush1.msra.mxu0 0.0
    %67 = vmatprep.subr.mxu0 0.0
    %68 = vmatpush1.msra.mxu0 0.0
    %69 = vmatprep.subr.mxu0 0.0
    %70 = vmatpush1.msra.mxu0 0.0
    %71 = vmatprep.subr.mxu0 0.0
    %72 = vmatpush1.msra.mxu0 0.0
    %73 = vmatprep.subr.mxu0 0.0
    %74 = vmatpush1.msra.mxu0 0.0
    %75 = vmatprep.subr.mxu0 0.0
    %76 = vmatpush1.msra.mxu0 0.0
    %77 = vmatprep.subr.mxu0 0.0
    %78 = vmatpush1.msra.mxu0 0.0
    %79 = vmatprep.subr.mxu0 0.0
    %80 = vmatpush1.msra.mxu0 0.0
    %81 = vmatprep.subr.mxu0 0.0
    %82 = vmatpush1.msra.mxu0 0.0
    %83 = vmatprep.subr.mxu0 0.0
    %84 = vmatpush1.msra.mxu0 0.0
    %85 = vmatprep.subr.mxu0 0.0
    %86 = vmatpush1.msra.mxu0 0.0
    %87 = vmatprep.subr.mxu0 0.0
    %88 = vmatpush1.msra.mxu0 0.0
    %89 = vmatprep.subr.mxu0 0.0
    %90 = vmatpush1.msra.mxu0 0.0
    %91 = vmatprep.subr.mxu0 0.0
    %92 = vmatpush1.msra.mxu0 0.0
    %93 = vmatprep.subr.mxu0 0.0
    %94 = vmatpush1.msra.mxu0 0.0
    %95 = vmatprep.subr.mxu0 0.0
    %96 = vmatpush1.msra.mxu0 0.0
    %97 = vmatprep.subr.mxu0 0.0
    %98 = vmatpush1.msra.mxu0 0.0
    %99 = vmatprep.subr.mxu0 0.0
    %100 = vmatpush1.msra.mxu0 0.0
    %101 = vmatprep.subr.mxu0 0.0
    %102 = vmatpush1.msra.mxu0 0.0
    %103 = vmatprep.subr.mxu0 0.0
    %104 = vmatpush1.msra.mxu0 0.0
    %105 = vmatprep.subr.mxu0 0.0
    %106 = vmatpush1.msra.mxu0 0.0
    %107 = vmatprep.subr.mxu0 0.0
    %108 = vmatpush1.msra.mxu0 0.0
    %109 = vmatprep.subr.mxu0 0.0
    %110 = vmatpush1.msra.mxu0 0.0
    %111 = vmatprep.subr.mxu0 0.0
    %112 = vmatpush1.msra.mxu0 0.0
    %113 = vmatprep.subr.mxu0 0.0
    %114 = vmatpush1.msra.mxu0 0.0
    %115 = vmatprep.subr.mxu0 0.0
    %116 = vmatpush1.msra.mxu0 0.0
    %117 = vmatprep.mubr.f32.mxu0 0.0
    %118 = vmatmul.mubr.f32.gmra.mrb[0].mxu0 %v51
    %v119 = vpop.f32.mrb[0].mxu0
    %v120 = vadd.f32 %v47, %v119
    %v121 = vpop.f32.mrb[0].mxu0
    %122 = vdwg.mxu0
    %vm123 = vcmask 261120
    %124 = vst.msk [vmem:[#allocation5] sm:$0xff] %vm123, %v120
    %v125 = vld [vmem:[%s1] sm:$0xff]
    %v126 = vrcp.pop 20.0
    %v127 = vmul.f32 %v125, %v126
    %v128 = vld [vmem:[%s4] sm:$0x7]
    %v129 = vld [vmem:[%s5] sm:$0x1]
    %v131 = vlaneseq
    %v132 = vshrl.u32 %v131, 7
    %v133 = vsub.s32 0, %v132
    %v134 = vrot.slane %v129, %v133
    %vm136 = vcmask 23552
    %v138 = vsel %vm136, %v127, 0
    %vm140 = vcmask 1042432
    %v142 = vsel %vm140, %v128, 0
    %144 = vmatprep.subr.mxu0 0.0
    %145 = vmatpush1.msra.mxu0 %v142
    %146 = vmatprep.subr.mxu0 0.0
    %147 = vmatpush1.msra.mxu0 0.0
    %148 = vmatprep.subr.mxu0 0.0
    %149 = vmatpush1.msra.mxu0 0.0
    %150 = vmatprep.subr.mxu0 0.0
    %151 = vmatpush1.msra.mxu0 0.0
    %152 = vmatprep.subr.mxu0 0.0
    %153 = vmatpush1.msra.mxu0 0.0
    %154 = vmatprep.subr.mxu0 0.0
    %155 = vmatpush1.msra.mxu0 0.0
    %156 = vmatprep.subr.mxu0 0.0
    %157 = vmatpush1.msra.mxu0 0.0
    %158 = vmatprep.subr.mxu0 0.0
    %159 = vmatpush1.msra.mxu0 0.0
    %160 = vmatprep.subr.mxu0 0.0
    %161 = vmatpush1.msra.mxu0 0.0
    %162 = vmatprep.subr.mxu0 0.0
    %163 = vmatpush1.msra.mxu0 0.0
    %164 = vmatprep.subr.mxu0 0.0
    %165 = vmatpush1.msra.mxu0 0.0
    %166 = vmatprep.subr.mxu0 0.0
    %167 = vmatpush1.msra.mxu0 0.0
    %168 = vmatprep.subr.mxu0 0.0
    %169 = vmatpush1.msra.mxu0 0.0
    %170 = vmatprep.subr.mxu0 0.0
    %171 = vmatpush1.msra.mxu0 0.0
    %172 = vmatprep.subr.mxu0 0.0
    %173 = vmatpush1.msra.mxu0 0.0
    %174 = vmatprep.subr.mxu0 0.0
    %175 = vmatpush1.msra.mxu0 0.0
    %176 = vmatprep.subr.mxu0 0.0
    %177 = vmatpush1.msra.mxu0 0.0
    %178 = vmatprep.subr.mxu0 0.0
    %179 = vmatpush1.msra.mxu0 0.0
    %180 = vmatprep.subr.mxu0 0.0
    %181 = vmatpush1.msra.mxu0 0.0
    %182 = vmatprep.subr.mxu0 0.0
    %183 = vmatpush1.msra.mxu0 0.0
    %184 = vmatprep.subr.mxu0 0.0
    %185 = vmatpush1.msra.mxu0 0.0
    %186 = vmatprep.subr.mxu0 0.0
    %187 = vmatpush1.msra.mxu0 0.0
    %188 = vmatprep.subr.mxu0 0.0
    %189 = vmatpush1.msra.mxu0 0.0
    %190 = vmatprep.subr.mxu0 0.0
    %191 = vmatpush1.msra.mxu0 0.0
    %192 = vmatprep.subr.mxu0 0.0
    %193 = vmatpush1.msra.mxu0 0.0
    %194 = vmatprep.subr.mxu0 0.0
    %195 = vmatpush1.msra.mxu0 0.0
    %196 = vmatprep.subr.mxu0 0.0
    %197 = vmatpush1.msra.mxu0 0.0
    %198 = vmatprep.subr.mxu0 0.0
    %199 = vmatpush1.msra.mxu0 0.0
    %200 = vmatprep.subr.mxu0 0.0
    %201 = vmatpush1.msra.mxu0 0.0
    %202 = vmatprep.subr.mxu0 0.0
    %203 = vmatpush1.msra.mxu0 0.0
    %204 = vmatprep.subr.mxu0 0.0
    %205 = vmatpush1.msra.mxu0 0.0
    %206 = vmatprep.subr.mxu0 0.0
    %207 = vmatpush1.msra.mxu0 0.0
    %208 = vmatprep.mubr.f32.mxu0 0.0
    %209 = vmatmul.mubr.f32.gmra.mrb[0].mxu0 %v138
    %v210 = vpop.f32.mrb[0].mxu0
    %v211 = vadd.f32 %v134, %v210
    %v212 = vpop.f32.mrb[0].mxu0
    %213 = vdwg.mxu0
    %vm214 = vcmask 392192
    %215 = vst.msk [vmem:[#allocation6] sm:$0xff] %vm214, %v211
    // Predicated region
    $region30: #{tpu_custom_call.1} parent=1 // pred_check
      _
    $region31: #{tpu_custom_call.1} parent=1 // pred_check_branch
      %217 = sbr.rel (0) target = $region33
    $region32: #{tpu_custom_call.1} parent=1 // pred_region
      %s219 = ssub.s32 128, 128
      %220 = vsyncadd [#allocation4], %s219
      %s222 = sshll.u32 [#allocation5], 4
      %s223 = int_to_ptr.vmem [resolvable:$true] %s222
      %225 = dma.vmem_to_hbm [thread:$0]  %s223, 128, %s6, [#allocation4]
    $region33: #{tpu_custom_call.1} parent=1 // pred_fallthru
      _
    // Predicated region
    $region34: #{tpu_custom_call.1} parent=1 // pred_check
      _
    $region35: #{tpu_custom_call.1} parent=1 // pred_check_branch
      %227 = sbr.rel (0) target = $region37
    $region36: #{tpu_custom_call.1} parent=1 // pred_region
      %s229 = ssub.s32 128, 128
      %230 = vsyncadd [#allocation7], %s229
      %s232 = sshll.u32 [#allocation6], 4
      %s233 = int_to_ptr.vmem [resolvable:$true] %s232
      %235 = dma.vmem_to_hbm [thread:$0]  %s233, 128, %s7, [#allocation7]
    $region37: #{tpu_custom_call.1} parent=1 // pred_fallthru
      _
    // Predicated region
    $region38: #{tpu_custom_call.1} parent=1 // pred_check
      _
    $region39: #{tpu_custom_call.1} parent=1 // pred_check_branch
      %237 = sbr.rel (0) target = $region41
    $region40: #{tpu_custom_call.1} parent=1 // pred_region
      %238 = dma.done [#allocation4], 128
    $region41: #{tpu_custom_call.1} parent=1 // pred_fallthru
      _
    // Predicated region
    $region42: #{tpu_custom_call.1} parent=1 // pred_check
      _
    $region43: #{tpu_custom_call.1} parent=1 // pred_check_branch
      %240 = sbr.rel (0) target = $region45
    $region44: #{tpu_custom_call.1} parent=1 // pred_region
      %241 = dma.done [#allocation7], 128
    $region45: #{tpu_custom_call.1} parent=1 // pred_fallthru
      _
    %242 = vsyncpa [#allocation3], 1
    %243 = vsyncpa [#allocation4], 1
    %244 = vsyncpa [#allocation7], 1

</llo_original>
